<compile_context>
chip_gen: v7x
topology: tpu7x:2x2x1
jax: 0.10.0
libtpu: 0.0.40
codegen_flags: <defaults>
</compile_context>

<pallas_src>
import functools

import jax
import jax.numpy as jnp
from jax.experimental import pallas as pl
from jax.experimental.pallas import tpu as pltpu


def _round_up(x, m):
    return ((x + m - 1) // m) * m


def _tpu_vmem_capacity_bytes():
    try:
        cap = getattr(pltpu.get_tpu_info(), "vmem_capacity_bytes", None)
        if cap:
            return int(cap)
    except Exception:
        pass
    return 64 << 20  # conservative default: v7x per-TC VMEM


def _vmem_budget_bytes():
    cap = _tpu_vmem_capacity_bytes()
    if cap <= (64 << 20):
        # v7x: 64 MiB is the entire per-TC VMEM; leave headroom for Mosaic scratch.
        return cap - (12 << 20)
    # v5e / v6e: 128 MiB physical; allow big resident operands but keep headroom.
    return min(cap - (16 << 20), 100 << 20)


def _vmem_limit(footprint, budget):
    return int(min(budget, max(16 << 20, footprint + (6 << 20))))


def _pick_block_n(n128):
    # Largest tile in {1024, 512, 256, 128} that keeps >=2 row tiles (v7x megacore)
    # and <=12.5% row-padding overhead; 128 otherwise.
    for cand in (1024, 512, 256, 128):
        n_pad = _round_up(n128, cand)
        if n_pad // cand >= 2 and (n_pad - n128) * 8 <= n128:
            return cand
    return 128


# ---------------------------------------------------------------------------
# Kernel 1: wf = x @ W_t + b   (row-tiled linear; bias added exactly once per tile)
# ---------------------------------------------------------------------------
def _linear_kernel(x_ref, w_ref, b_ref, o_ref):
    acc = jnp.dot(x_ref[...], w_ref[...], preferred_element_type=jnp.float32)
    o_ref[...] = (acc + b_ref[...]).astype(o_ref.dtype)


def _linear(x_pad, w_pad, b_pad, block_n, out_dtype, budget):
    n_pad, f_in = x_pad.shape
    f_pad = w_pad.shape[1]
    out_isz = jnp.dtype(out_dtype).itemsize
    footprint = (
        2 * block_n * f_in * 4          # x tiles (double buffered)
        + 2 * f_in * f_pad * 4          # weights
        + 2 * f_pad * 4                 # bias
        + 2 * block_n * f_pad * out_isz # output tiles
    )
    return pl.pallas_call(
        _linear_kernel,
        out_shape=jax.ShapeDtypeStruct((n_pad, f_pad), out_dtype),
        grid_spec=pltpu.PrefetchScalarGridSpec(
            num_scalar_prefetch=0,
            grid=(n_pad // block_n,),
            in_specs=[
                pl.BlockSpec((block_n, f_in), lambda i: (i, 0)),
                pl.BlockSpec((f_in, f_pad), lambda i: (0, 0)),
                pl.BlockSpec((1, f_pad), lambda i: (0, 0)),
            ],
            out_specs=pl.BlockSpec((block_n, f_pad), lambda i: (i, 0)),
        ),
        compiler_params=pltpu.CompilerParams(
            dimension_semantics=("parallel",),
            vmem_limit_bytes=_vmem_limit(footprint, budget),
        ),
    )(x_pad, w_pad, b_pad)


# ---------------------------------------------------------------------------
# Kernel 2: tiled graph matmul    out = [mult *] (A @ V)
#   A    : [n_pad, n_pad]  int8 (or float) adjacency, streamed (block_n, block_n) tiles
#   V    : [n_pad, f_pad]  wf / had; VMEM-resident across K if it fits, else streamed
#   mult : optional [n_pad, f_pad], fused elementwise at reduction finalize
# Grid = (row tiles [parallel], K tiles [arbitrary]).
# f32 output accumulates directly in the resident output block; bf16 output uses an
# f32 VMEM scratch accumulator.
# ---------------------------------------------------------------------------
def _graph_mm_kernel(*refs, block_n, hadamard, resident_v, use_scratch, mxu_dtype):
    it = iter(refs)
    a_ref = next(it)
    v_ref = next(it)
    m_ref = next(it) if hadamard else None
    o_ref = next(it)
    acc_ref = next(it) if use_scratch else o_ref

    k = pl.program_id(1)

    @pl.when(k == 0)
    def _init():
        acc_ref[...] = jnp.zeros_like(acc_ref)

    a = a_ref[...]
    if a.dtype != mxu_dtype:
        # int8 0/1 adjacency -> MXU dtype (VPU cast, hidden under DMA / MXU slack).
        a = a.astype(jnp.float32).astype(mxu_dtype)

    if resident_v:
        start = pl.multiple_of(k * block_n, 128)
        v = v_ref[pl.ds(start, block_n), :]
    else:
        v = v_ref[...]
    if v.dtype != mxu_dtype:
        v = v.astype(mxu_dtype)

    acc_ref[...] += jnp.dot(a, v, preferred_element_type=jnp.float32)

    if hadamard or use_scratch:
        @pl.when(k == pl.num_programs(1) - 1)
        def _finalize():
            acc = acc_ref[...]
            if m_ref is not None:
                acc = m_ref[...].astype(jnp.float32) * acc  # fused Hadamard
            o_ref[...] = acc.astype(o_ref.dtype)


def _graph_matmul(adj_pad, v, mult, block_n, mxu_dtype, out_dtype, budget):
    n_pad = adj_pad.shape[0]
    f_pad = v.shape[1]
    n_tiles = n_pad // block_n

    adj_isz = jnp.dtype(adj_pad.dtype).itemsize
    v_isz = jnp.dtype(v.dtype).itemsize
    out_isz = jnp.dtype(out_dtype).itemsize
    use_scratch = jnp.dtype(out_dtype) != jnp.dtype(jnp.float32)

    base = (
        2 * block_n * block_n * adj_isz
        + (2 * block_n * f_pad * jnp.dtype(mult.dtype).itemsize if mult is not None else 0)
        + 2 * block_n * f_pad * out_isz
        + (block_n * f_pad * 4 if use_scratch else 0)
    )
    resident_bytes = 2 * n_pad * f_pad * v_isz     # conservative (double-buffer bound)
    streamed_bytes = 2 * block_n * f_pad * v_isz
    resident_v = n_tiles > 1 and (base + resident_bytes) <= budget
    footprint = base + (resident_bytes if resident_v else streamed_bytes)

    if resident_v:
        v_spec = pl.BlockSpec((n_pad, f_pad), lambda i, k: (0, 0))   # read once
    else:
        v_spec = pl.BlockSpec((block_n, f_pad), lambda i, k: (k, 0))  # streamed K-slices

    in_specs = [pl.BlockSpec((block_n, block_n), lambda i, k: (i, k)), v_spec]
    operands = [adj_pad, v]
    if mult is not None:
        in_specs.append(pl.BlockSpec((block_n, f_pad), lambda i, k: (i, 0)))
        operands.append(mult)

    scratch_shapes = [pltpu.VMEM((block_n, f_pad), jnp.float32)] if use_scratch else []

    kernel = functools.partial(
        _graph_mm_kernel,
        block_n=block_n,
        hadamard=mult is not None,
        resident_v=resident_v,
        use_scratch=use_scratch,
        mxu_dtype=mxu_dtype,
    )
    return pl.pallas_call(
        kernel,
        out_shape=jax.ShapeDtypeStruct((n_pad, f_pad), out_dtype),
        grid_spec=pltpu.PrefetchScalarGridSpec(
            num_scalar_prefetch=0,
            grid=(n_tiles, n_tiles),
            in_specs=in_specs,
            out_specs=pl.BlockSpec((block_n, f_pad), lambda i, k: (i, 0)),
            scratch_shapes=scratch_shapes,
        ),
        compiler_params=pltpu.CompilerParams(
            dimension_semantics=("parallel", "arbitrary"),
            vmem_limit_bytes=_vmem_limit(footprint, budget),
        ),
    )(*operands)


# ---------------------------------------------------------------------------
# Public wrapper
# ---------------------------------------------------------------------------
def interaction_graph_convolution(
    node_features,
    weight_t,
    bias,
    adjacency_matrix,
    sibling_adj,
    *,
    block_n=None,
    mxu_dtype=jnp.bfloat16,
    adj_dtype=jnp.int8,
):
    """Pallas implementation of Interaction_GraphConvolution.forward.

    Args:
      node_features:    [N, F_in]
      weight_t:         [F_in, F_out]  (transposed PyTorch Linear weight)
      bias:             [F_out] or [1, F_out]
      adjacency_matrix: [N, N]
      sibling_adj:      [N, N]
      block_n:          row / K tile for the adjacency matmuls (multiple of 128);
                        None -> auto (>=2 row tiles whenever N >= 256, <=12.5% padding).
      mxu_dtype:        bfloat16 (default) -> native bf16 MXU rate; wf/had intermediates
                        are bf16, final output f32.  float32 -> exact vs the f32 reference.
      adj_dtype:        HBM storage dtype for the two adjacency operands.  int8 (default)
                        is exact only for integer 0/1 graphs; pass jnp.float32 (or
                        jnp.bfloat16) for weighted / normalized adjacency matrices.
    Returns:
      [N, F_out] float32
    """
    n, f_in = node_features.shape
    f_out = weight_t.shape[1]

    n128 = _round_up(n, 128)
    if block_n is None:
        block_n = _pick_block_n(n128)
    else:
        block_n = max(128, _round_up(block_n, 128))
        block_n = min(block_n, n128)
    n_pad = _round_up(n128, block_n)

    f_pad = _round_up(f_out, 128)
    f_in_pad = _round_up(f_in, 128)

    budget = _vmem_budget_bytes()
    inter_dtype = (
        jnp.bfloat16 if jnp.dtype(mxu_dtype) == jnp.dtype(jnp.bfloat16) else jnp.float32
    )

    x_pad = jnp.pad(
        node_features.astype(jnp.float32), ((0, n_pad - n), (0, f_in_pad - f_in))
    )
    w_pad = jnp.pad(
        weight_t.astype(jnp.float32), ((0, f_in_pad - f_in), (0, f_pad - f_out))
    )
    b_pad = jnp.pad(
        jnp.reshape(bias, (1, -1)).astype(jnp.float32), ((0, 0), (0, f_pad - f_out))
    )
    # Adjacency operands stored compactly in HBM (exact for 0/1 graphs).
    adj_pad = jnp.pad(
        adjacency_matrix.astype(adj_dtype), ((0, n_pad - n), (0, n_pad - n))
    )
    sib_pad = jnp.pad(
        sibling_adj.astype(adj_dtype), ((0, n_pad - n), (0, n_pad - n))
    )

    # TODO(synk): multi-graph batching via a leading grid axis (amortizing per-step
    # overhead across many small graphs in one pallas_call) is not implemented.
    wf = _linear(x_pad, w_pad, b_pad, block_n, inter_dtype, budget)        # [n_pad, f_pad]
    had = _graph_matmul(sib_pad, wf, wf, block_n, mxu_dtype, inter_dtype, budget)
    out = _graph_matmul(adj_pad, had, None, block_n, mxu_dtype, jnp.float32, budget)
    return out[:n, :f_out]


def _reference(node_features, weight_t, bias, adjacency_matrix, sibling_adj):
    hi = jax.lax.Precision.HIGHEST
    wf = jnp.dot(node_features.astype(jnp.float32),
                 weight_t.astype(jnp.float32), precision=hi)
    wf = wf + jnp.reshape(bias, (1, -1)).astype(jnp.float32)
    temp = jnp.dot(sibling_adj.astype(jnp.float32), wf, precision=hi)
    had = wf * temp
    return jnp.dot(adjacency_matrix.astype(jnp.float32), had, precision=hi)


if __name__ == "__main__":
    # Small deterministic example. N and F_out are deliberately NOT multiples of the
    # tile sizes to exercise the padding path (padded internally to 256 x 128, 2x2 grid).
    N = 200      # number of graph nodes
    F_IN = 64    # in_features
    F_OUT = 96   # out_features

    key = jax.random.PRNGKey(0)
    k_x, k_w, k_b, k_a, k_s = jax.random.split(key, 5)

    node_features = jax.random.normal(k_x, (N, F_IN), dtype=jnp.float32)

    # Deterministic "Linear" params (PyTorch-style uniform range, fixed seed).
    bound = 1.0 / (F_IN ** 0.5)
    weight = jax.random.uniform(k_w, (F_OUT, F_IN), minval=-bound, maxval=bound,
                                dtype=jnp.float32)   # PyTorch layout [out, in]
    bias = jax.random.uniform(k_b, (F_OUT,), minval=-bound, maxval=bound,
                              dtype=jnp.float32)
    weight_t = weight.T                              # [F_in, F_out] for the kernel

    # Random sparse-ish 0/1 adjacency matrices.
    adjacency_matrix = (jax.random.uniform(k_a, (N, N)) < 0.1).astype(jnp.float32)
    sibling_adj = (jax.random.uniform(k_s, (N, N)) < 0.1).astype(jnp.float32)

    ref = _reference(node_features, weight_t, bias, adjacency_matrix, sibling_adj)

    # Default fast path: int8 adjacency, bf16 MXU, bf16 intermediates, resident V.
    out_fast = interaction_graph_convolution(
        node_features, weight_t, bias, adjacency_matrix, sibling_adj)
    out_fast = jax.block_until_ready(out_fast)
    assert out_fast.shape == (N, F_OUT)
    rel_err = jnp.max(jnp.abs(out_fast - ref)) / jnp.max(jnp.abs(ref))
    assert rel_err < 5e-2, f"bf16 path relative error too large: {rel_err}"

    # Exactness mode: f32 MXU and f32 intermediates (int8 adjacency is exact for 0/1).
    out_exact = interaction_graph_convolution(
        node_features, weight_t, bias, adjacency_matrix, sibling_adj,
        block_n=128, mxu_dtype=jnp.float32)
    out_exact = jax.block_until_ready(out_exact)
    assert jnp.allclose(out_exact, ref, atol=1e-3, rtol=1e-3), \
        "f32 path mismatch vs reference"

    print("KERNEL_OK")
</pallas_src>

<mosaic_0001>
module attributes {stable_mosaic.version = 11 : i64} {
  func.func @_linear_kernel(%arg0: i32, %arg1: memref<128x128xf32, #tpu.memory_space<vmem>>, %arg2: memref<128x128xf32, #tpu.memory_space<vmem>>, %arg3: memref<1x128xf32, #tpu.memory_space<vmem>>, %arg4: memref<128x128xbf16, #tpu.memory_space<vmem>>) attributes {dimension_semantics = [#tpu.dimension_semantics<parallel>], iteration_bounds = array<i64: 2>, scalar_prefetch = 0 : i64, scratch_operands = 0 : i64, tpu.core_type = #tpu.core_type<tc>, window_params = [{transform_indices = @transform_0, window_bounds = array<i64: 128, 128>}, {pipeline_mode = #tpu.pipeline_mode<synchronous>, transform_indices = @transform_1, window_bounds = array<i64: 128, 128>}, {pipeline_mode = #tpu.pipeline_mode<synchronous>, transform_indices = @transform_2, window_bounds = array<i64: 1, 128>}, {transform_indices = @transform_3, window_bounds = array<i64: 128, 128>}]} {
    %c0 = arith.constant 0 : index
    %c0_0 = arith.constant 0 : index
    %0 = vector.load %arg1[%c0, %c0_0] : memref<128x128xf32, #tpu.memory_space<vmem>>, vector<128x128xf32>
    %c0_1 = arith.constant 0 : index
    %c0_2 = arith.constant 0 : index
    %1 = vector.load %arg2[%c0_1, %c0_2] : memref<128x128xf32, #tpu.memory_space<vmem>>, vector<128x128xf32>
    %cst = arith.constant dense<0.000000e+00> : vector<128x128xf32>
    %2 = tpu.matmul %0, %1, %cst {dimension_numbers = #tpu.dot_dimension_numbers<[1], [0], [0], [1], [0, 0, 1, 1], [], []>} : vector<128x128xf32>, vector<128x128xf32>, vector<128x128xf32> -> vector<128x128xf32>
    %c0_3 = arith.constant 0 : index
    %c0_4 = arith.constant 0 : index
    %3 = vector.load %arg3[%c0_3, %c0_4] : memref<1x128xf32, #tpu.memory_space<vmem>>, vector<1x128xf32>
    %4 = vector.broadcast %3 : vector<1x128xf32> to vector<128x128xf32>
    %5 = arith.addf %2, %4 : vector<128x128xf32>
    %6 = arith.truncf %5 : vector<128x128xf32> to vector<128x128xbf16>
    %c0_5 = arith.constant 0 : index
    %c0_6 = arith.constant 0 : index
    %7 = vector.load %arg4[%c0_5, %c0_6] : memref<128x128xbf16, #tpu.memory_space<vmem>>, vector<128x128xbf16>
    tpu.vector_store %arg4[%c0_5, %c0_6], %6 {strides = array<i32>} : memref<128x128xbf16, #tpu.memory_space<vmem>>, vector<128x128xbf16>,
    return
  }
  func.func @transform_0(%arg0: i32) -> (i32, i32) {
    %c0_i32 = arith.constant 0 : i32
    %c0_i32_0 = arith.constant 0 : i32
    return %arg0, %c0_i32 : i32, i32
  }
  func.func @transform_1(%arg0: i32) -> (i32, i32) {
    %c0_i32 = arith.constant 0 : i32
    %c0_i32_0 = arith.constant 0 : i32
    %c0_i32_1 = arith.constant 0 : i32
    return %c0_i32, %c0_i32_0 : i32, i32
  }
  func.func @transform_2(%arg0: i32) -> (i32, i32) {
    %c0_i32 = arith.constant 0 : i32
    %c0_i32_0 = arith.constant 0 : i32
    %c0_i32_1 = arith.constant 0 : i32
    return %c0_i32, %c0_i32_0 : i32, i32
  }
  func.func @transform_3(%arg0: i32) -> (i32, i32) {
    %c0_i32 = arith.constant 0 : i32
    %c0_i32_0 = arith.constant 0 : i32
    return %arg0, %c0_i32 : i32, i32
  }
}

</mosaic_0001>

<llo_original>
// kernel: tpu_custom_call.1
$region0: #{tpu_custom_call.1}
  #allocation0 [shape = 'u32[]', space=smem, size = 0x4, offset = 0x4, fixed_abs, tag = 'smem constant byte address 0x4 - core index']
  #allocation1 [shape = 'u32[144,128]{1,0:T(1,128)}', space=vmem, size = 0x12000, scoped, tag = 'internal scratch']
  %s0 = inlined_call_operand.hbm [shape: f32[256,128], index: 0, kind: input, shape index: {}]
  %s1 = inlined_call_operand.hbm [shape: f32[128,128], index: 1, kind: input, shape index: {}]
  %s2 = inlined_call_operand.vmem [shape: f32[1,128], index: 2, kind: input, shape index: {}]
  %s3 = inlined_call_operand.hbm [shape: bf16[256,128], index: 3, kind: output, shape index: {}]
  %s4 = sld [smem:[#allocation0]]
  $region53: #{tpu_custom_call.1} parent=0
    _
  %s6 = ssub.s32 1, %s4
  %s7 = scalar_select 0, %s6, %s4
  $region1: #{tpu_custom_call.1} parent=0
    #allocation2 [shape = 'u8[131072]{0}', space=vmem, size = 0x20000, scoped, tag = 'input window, operand 0']
    #allocation3 [shape = 's32[2]{0}', space=sflag, size = 0x8, scoped, tag = 'scoped memory for tpu_custom_call.1']
    #allocation4 [shape = 's32[2]{0}', space=sflag, size = 0x8, scoped, tag = 'scoped memory for tpu_custom_call.1']
    #allocation5 [shape = 'u8[65536]{0}', space=vmem, size = 0x10000, scoped, tag = 'input window, operand 1, single buffered']
    #allocation6 [shape = 's32[1]{0}', space=sflag, size = 0x4, scoped, tag = 'scoped memory for tpu_custom_call.1']
    #allocation7 [shape = 'u8[65536]{0}', space=vmem, size = 0x10000, scoped, tag = 'output window, operand 0']
    %8 = vsyncpa [#allocation3], 0
    %s9 = scalar_lea.sflag [#allocation3], 1
    %10 = vsyncpa %s9, 0
    %11 = vsyncpa [#allocation6], 0
    %12 = vsyncpa [#allocation4], 0
    %s13 = scalar_lea.sflag [#allocation4], 1
    %14 = vsyncpa %s13, 0
    loop: start=0, step=1, limit=4
    $region2: #{tpu_custom_call.1} parent=1 // loop_pre_header
      _
    $region3: #{tpu_custom_call.1} parent=1 // loop_header
      %s16 = sphi 0, %s20
      %p17 = scmp.ge.s32.totalorder %s16, 4
      %s26 = sphi 0, %s28
      %s29 = sphi 0, %s26
      %s30 = sphi 0, %s29
      %s46 = sphi 0, %s30
      %s50 = sphi 0, %s50
      %s52 = sphi 0, %s50
      %s53 = sphi 0, %s52
      %s67 = sphi 0, %s53
      %s71 = sphi 0, %s71
      %s73 = sphi 0, %s71
      %s74 = sphi 0, %s73
      %s88 = sphi 0, %s74
      %s94 = sphi 0, %s96
      %s97 = sphi 0, %s94
      %s98 = sphi 0, %s97
      %s114 = sphi 0, %s98
    $region4: #{tpu_custom_call.1} parent=1 // loop_header_branch
      %19 = sbr.rel (%p17) target = $region8
    $region5: #{tpu_custom_call.1} parent=1 // loop_body
      %s21 = ssub.s32 %s16, 1
      %s22 = ssub.s32 %s16, 2
      %s23 = sadd.s32 %s16, 1
      %s24 = ssub.s32 %s16, %s23
      %p25 = scmp.eq.s32.totalorder %s24, 0
      %s27 = sadd.s32 %s26, 1
      %s28 = scalar_select %p25, %s26, %s27
      %p31 = pneg %p25
      %p32 = scmp.eq.s32.totalorder %s16, 1
      %p33 = por %p31, %p32
      %p34 = scmp.ne.s32.totalorder %s26, %s29
      %p35 = scmp.eq.s32.totalorder %s16, 0
      %p36 = por %p34, %p35
      %p37 = scmp.ne.s32.totalorder %s26, %s29
      %p38 = scmp.eq.s32.totalorder %s21, 1
      %p39 = por %p37, %p38
      %p40 = scmp.ne.s32.totalorder %s29, %s30
      %p41 = scmp.eq.s32.totalorder %s21, 0
      %p42 = por %p40, %p41
      %p43 = scmp.ne.s32.totalorder %s29, %s30
      %p44 = scmp.eq.s32.totalorder %s22, 1
      %p45 = por %p43, %p44
      %p47 = scmp.ne.s32.totalorder %s30, %s46
      %p48 = scmp.eq.s32.totalorder %s22, 0
      %p49 = por %p47, %p48
      %s51 = sadd.s32 %s50, 1
      %p54 = scmp.eq.s32.totalorder %s16, 1
      %p55 = scmp.ne.s32.totalorder %s50, %s52
      %p56 = scmp.eq.s32.totalorder %s16, 0
      %p57 = por %p55, %p56
      %p58 = scmp.ne.s32.totalorder %s50, %s52
      %p59 = scmp.eq.s32.totalorder %s21, 1
      %p60 = por %p58, %p59
      %p61 = scmp.ne.s32.totalorder %s52, %s53
      %p62 = scmp.eq.s32.totalorder %s21, 0
      %p63 = por %p61, %p62
      %p64 = scmp.ne.s32.totalorder %s52, %s53
      %p65 = scmp.eq.s32.totalorder %s22, 1
      %p66 = por %p64, %p65
      %p68 = scmp.ne.s32.totalorder %s53, %s67
      %p69 = scmp.eq.s32.totalorder %s22, 0
      %p70 = por %p68, %p69
      %s72 = sadd.s32 %s71, 1
      %p75 = scmp.eq.s32.totalorder %s16, 1
      %p76 = scmp.ne.s32.totalorder %s71, %s73
      %p77 = scmp.eq.s32.totalorder %s16, 0
      %p78 = por %p76, %p77
      %p79 = scmp.ne.s32.totalorder %s71, %s73
      %p80 = scmp.eq.s32.totalorder %s21, 1
      %p81 = por %p79, %p80
      %p82 = scmp.ne.s32.totalorder %s73, %s74
      %p83 = scmp.eq.s32.totalorder %s21, 0
      %p84 = por %p82, %p83
      %p85 = scmp.ne.s32.totalorder %s73, %s74
      %p86 = scmp.eq.s32.totalorder %s22, 1
      %p87 = por %p85, %p86
      %p89 = scmp.ne.s32.totalorder %s74, %s88
      %p90 = scmp.eq.s32.totalorder %s22, 0
      %p91 = por %p89, %p90
      %s92 = ssub.s32 %s16, %s23
      %p93 = scmp.eq.s32.totalorder %s92, 0
      %s95 = sadd.s32 %s94, 1
      %s96 = scalar_select %p93, %s94, %s95
      %p99 = pneg %p93
      %p100 = scmp.eq.s32.totalorder %s16, 1
      %p101 = por %p99, %p100
      %p102 = scmp.ne.s32.totalorder %s94, %s97
      %p103 = scmp.eq.s32.totalorder %s16, 0
      %p104 = por %p102, %p103
      %p105 = scmp.ne.s32.totalorder %s94, %s97
      %p106 = scmp.eq.s32.totalorder %s21, 1
      %p107 = por %p105, %p106
      %p108 = scmp.ne.s32.totalorder %s97, %s98
      %p109 = scmp.eq.s32.totalorder %s21, 0
      %p110 = por %p108, %p109
      %p111 = scmp.ne.s32.totalorder %s97, %s98
      %p112 = scmp.eq.s32.totalorder %s22, 1
      %p113 = por %p111, %p112
      %p115 = scmp.ne.s32.totalorder %s98, %s114
      %p116 = scmp.eq.s32.totalorder %s22, 0
      %p117 = por %p115, %p116
      %p118 = scmp.le.s32.totalorder 1, %s16
      %p119 = scmp.lt.s32.totalorder %s16, 3
      %p120 = pnand %p118, %p119
      %p121 = pneg %p120
      // Predicated region
      $region9: #{tpu_custom_call.1} parent=5 // pred_check
        _
      $region10: #{tpu_custom_call.1} parent=5 // pred_check_branch
        %123 = sbr.rel (%p120) target = $region12
      $region11: #{tpu_custom_call.1} parent=5 // pred_region
        %s124 = ssub.s32 %s16, 1
        // Predicated region
        $region13: #{tpu_custom_call.1} parent=11 // pred_check
          %p125 = pneg %p63
        $region14: #{tpu_custom_call.1} parent=11 // pred_check_branch
          %127 = sbr.rel (%p125) target = $region16
        $region15: #{tpu_custom_call.1} parent=11 // pred_region
          %s129 = ssub.s32 2048, 2048
          %130 = vsyncadd [#allocation6], %s129
          %s131 = sshll.u32 [#allocation5], 4
          %s132 = int_to_ptr.vmem [resolvable:$true] %s131
          %137 = dma.hbm_to_vmem [thread:$0]  %s1, 2048, %s132, [#allocation6], 128, 128, 8
        $region16: #{tpu_custom_call.1} parent=11 // pred_fallthru
          _
        // Predicated region
        $region17: #{tpu_custom_call.1} parent=11 // pred_check
          %p138 = pneg %p84
        $region18: #{tpu_custom_call.1} parent=11 // pred_check_branch
          %140 = sbr.rel (%p138) target = $region20
        $region19: #{tpu_custom_call.1} parent=11 // pred_region
          _
        $region20: #{tpu_custom_call.1} parent=11 // pred_fallthru
          _
      $region12: #{tpu_custom_call.1} parent=5 // pred_fallthru
        _
      %p141 = scmp.lt.s32.totalorder %s16, 2
      // Predicated region
      $region21: #{tpu_custom_call.1} parent=5 // pred_check
        %p142 = pneg %p141
      $region22: #{tpu_custom_call.1} parent=5 // pred_check_branch
        %144 = sbr.rel (%p142) target = $region24
      $region23: #{tpu_custom_call.1} parent=5 // pred_region
        // Predicated region
        $region25: #{tpu_custom_call.1} parent=23 // pred_check
          %p145 = pneg %p36
        $region26: #{tpu_custom_call.1} parent=23 // pred_check_branch
          %147 = sbr.rel (%p145) target = $region28
        $region27: #{tpu_custom_call.1} parent=23 // pred_region
          %s148 = sand.u32 %s26, 1
          %s149 = scalar_lea.sflag [#allocation3], %s148
          %s150 = sand.u32 %s26, 1
          %s151 = smul.addr %s150, 128
          %s152 = scalar_lea.vmem [#allocation2], %s151
          %s153 = smul.u32 16, %s16
          %s155 = ssub.s32 2048, 2048
          %156 = vsyncadd %s149, %s155
          %s157 = smul.addr %s153, 128
          %s158 = scalar_lea.hbm %s0, %s157
          %s159 = sshll.u32 %s152, 4
          %s160 = int_to_ptr.vmem [resolvable:$true] %s159
          %165 = dma.hbm_to_vmem [thread:$0]  %s158, 2048, %s160, %s149, 128, 128, 8
        $region28: #{tpu_custom_call.1} parent=23 // pred_fallthru
          _
      $region24: #{tpu_custom_call.1} parent=5 // pred_fallthru
        _
      %p166 = scmp.le.s32.totalorder 1, %s16
      %p167 = scmp.lt.s32.totalorder %s16, 3
      %p168 = pnand %p166, %p167
      %p169 = pneg %p168
      // Predicated region
      $region29: #{tpu_custom_call.1} parent=5 // pred_check
        _
      $region30: #{tpu_custom_call.1} parent=5 // pred_check_branch
        %171 = sbr.rel (%p168) target = $region32
      $region31: #{tpu_custom_call.1} parent=5 // pred_region
        %s172 = ssub.s32 %s16, 1
        %s173 = sand.u32 %s29, 1
        %s174 = scalar_lea.sflag [#allocation3], %s173
        %s175 = sand.u32 %s29, 1
        %s176 = smul.addr %s175, 128
        %s177 = scalar_lea.vmem [#allocation2], %s176
        // Predicated region
        $region33: #{tpu_custom_call.1} parent=31 // pred_check
          %p178 = pneg %p42
        $region34: #{tpu_custom_call.1} parent=31 // pred_check_branch
          %180 = sbr.rel (%p178) target = $region36
        $region35: #{tpu_custom_call.1} parent=31 // pred_region
          %181 = dma.done %s174, 2048
        $region36: #{tpu_custom_call.1} parent=31 // pred_fallthru
          _
        // Predicated region
        $region37: #{tpu_custom_call.1} parent=31 // pred_check
          %p182 = pneg %p63
        $region38: #{tpu_custom_call.1} parent=31 // pred_check_branch
          %184 = sbr.rel (%p182) target = $region40
        $region39: #{tpu_custom_call.1} parent=31 // pred_region
          %185 = dma.done [#allocation6], 2048
        $region40: #{tpu_custom_call.1} parent=31 // pred_fallthru
          _
        %s186 = sand.u32 %s29, 1
        %s187 = scalar_lea.sflag [#allocation3], %s186
        %s188 = sand.u32 %s29, 1
        %s189 = smul.addr %s188, 128
        %s190 = scalar_lea.vmem [#allocation2], %s189
        %p191 = pneg %p42
        %p192 = pneg %p39
        %p193 = pneg %p63
        %p194 = pneg %p60
        %p195 = pneg %p84
        %p196 = pneg %p81
        %p197 = pneg %p110
        %p198 = pneg %p107
        %s199 = sand.u32 %s97, 1
        %s200 = scalar_lea.sflag [#allocation4], %s199
        %s201 = sand.u32 %s97, 1
        %s202 = smul.addr %s201, 64
        %s203 = scalar_lea.vmem [#allocation7], %s202
        %s204 = smul.u32 16, %s21
        %s205 = smul.u32 16, %s21
        %v206 = vld [vmem:[%s177] sm:$0xff]
        %v207 = vld [vmem:[%s177 + $0x8] sm:$0xff]
        %v208 = vld [vmem:[%s177 + $0x10] sm:$0xff]
        %v209 = vld [vmem:[%s177 + $0x18] sm:$0xff]
        %v210 = vld [vmem:[%s177 + $0x20] sm:$0xff]
        %v211 = vld [vmem:[%s177 + $0x28] sm:$0xff]
        %v212 = vld [vmem:[%s177 + $0x30] sm:$0xff]
        %v213 = vld [vmem:[%s177 + $0x38] sm:$0xff]
        %v214 = vld [vmem:[%s177 + $0x40] sm:$0xff]
        %v215 = vld [vmem:[%s177 + $0x48] sm:$0xff]
        %v216 = vld [vmem:[%s177 + $0x50] sm:$0xff]
        %v217 = vld [vmem:[%s177 + $0x58] sm:$0xff]
        %v218 = vld [vmem:[%s177 + $0x60] sm:$0xff]
        %v219 = vld [vmem:[%s177 + $0x68] sm:$0xff]
        %v220 = vld [vmem:[%s177 + $0x70] sm:$0xff]
        %v221 = vld [vmem:[%s177 + $0x78] sm:$0xff]
        %v222 = vld [vmem:[#allocation5] sm:$0xff]
        %v223 = vld [vmem:[#allocation5 + $0x8] sm:$0xff]
        %v224 = vld [vmem:[#allocation5 + $0x10] sm:$0xff]
        %v225 = vld [vmem:[#allocation5 + $0x18] sm:$0xff]
        %v226 = vld [vmem:[#allocation5 + $0x20] sm:$0xff]
        %v227 = vld [vmem:[#allocation5 + $0x28] sm:$0xff]
        %v228 = vld [vmem:[#allocation5 + $0x30] sm:$0xff]
        %v229 = vld [vmem:[#allocation5 + $0x38] sm:$0xff]
        %v230 = vld [vmem:[#allocation5 + $0x40] sm:$0xff]
        %v231 = vld [vmem:[#allocation5 + $0x48] sm:$0xff]
        %v232 = vld [vmem:[#allocation5 + $0x50] sm:$0xff]
        %v233 = vld [vmem:[#allocation5 + $0x58] sm:$0xff]
        %v234 = vld [vmem:[#allocation5 + $0x60] sm:$0xff]
        %v235 = vld [vmem:[#allocation5 + $0x68] sm:$0xff]
        %v236 = vld [vmem:[#allocation5 + $0x70] sm:$0xff]
        %v237 = vld [vmem:[#allocation5 + $0x78] sm:$0xff]
        %v238 = vld [vmem:[%s2] sm:$0x1]
        %v240 = vlaneseq
        %v241 = vshrl.u32 %v240, 7
        %v242 = vsub.s32 0, %v241
        %v243 = vrot.slane %v238, %v242
        %245 = vmatprep.subr.mxu0 0.0
        %246 = vmatpush1.msra.mxu0 %v222
        %247 = vmatprep.subr.mxu0 0.0
        %248 = vmatpush1.msra.mxu0 %v223
        %249 = vmatprep.subr.mxu0 0.0
        %250 = vmatpush1.msra.mxu0 %v224
        %251 = vmatprep.subr.mxu0 0.0
        %252 = vmatpush1.msra.mxu0 %v225
        %253 = vmatprep.subr.mxu0 0.0
        %254 = vmatpush1.msra.mxu0 %v226
        %255 = vmatprep.subr.mxu0 0.0
        %256 = vmatpush1.msra.mxu0 %v227
        %257 = vmatprep.subr.mxu0 0.0
        %258 = vmatpush1.msra.mxu0 %v228
        %259 = vmatprep.subr.mxu0 0.0
        %260 = vmatpush1.msra.mxu0 %v229
        %261 = vmatprep.subr.mxu0 0.0
        %262 = vmatpush1.msra.mxu0 %v230
        %263 = vmatprep.subr.mxu0 0.0
        %264 = vmatpush1.msra.mxu0 %v231
        %265 = vmatprep.subr.mxu0 0.0
        %266 = vmatpush1.msra.mxu0 %v232
        %267 = vmatprep.subr.mxu0 0.0
        %268 = vmatpush1.msra.mxu0 %v233
        %269 = vmatprep.subr.mxu0 0.0
        %270 = vmatpush1.msra.mxu0 %v234
        %271 = vmatprep.subr.mxu0 0.0
        %272 = vmatpush1.msra.mxu0 %v235
        %273 = vmatprep.subr.mxu0 0.0
        %274 = vmatpush1.msra.mxu0 %v236
        %275 = vmatprep.subr.mxu0 0.0
        %276 = vmatpush1.msra.mxu0 %v237
        %277 = vmatprep.subr.mxu0 0.0
        %278 = vmatpush1.msra.mxu0 0.0
        %279 = vmatprep.subr.mxu0 0.0
        %280 = vmatpush1.msra.mxu0 0.0
        %281 = vmatprep.subr.mxu0 0.0
        %282 = vmatpush1.msra.mxu0 0.0
        %283 = vmatprep.subr.mxu0 0.0
        %284 = vmatpush1.msra.mxu0 0.0
        %285 = vmatprep.subr.mxu0 0.0
        %286 = vmatpush1.msra.mxu0 0.0
        %287 = vmatprep.subr.mxu0 0.0
        %288 = vmatpush1.msra.mxu0 0.0
        %289 = vmatprep.subr.mxu0 0.0
        %290 = vmatpush1.msra.mxu0 0.0
        %291 = vmatprep.subr.mxu0 0.0
        %292 = vmatpush1.msra.mxu0 0.0
        %293 = vmatprep.subr.mxu0 0.0
        %294 = vmatpush1.msra.mxu0 0.0
        %295 = vmatprep.subr.mxu0 0.0
        %296 = vmatpush1.msra.mxu0 0.0
        %297 = vmatprep.subr.mxu0 0.0
        %298 = vmatpush1.msra.mxu0 0.0
        %299 = vmatprep.subr.mxu0 0.0
        %300 = vmatpush1.msra.mxu0 0.0
        %301 = vmatprep.subr.mxu0 0.0
        %302 = vmatpush1.msra.mxu0 0.0
        %303 = vmatprep.subr.mxu0 0.0
        %304 = vmatpush1.msra.mxu0 0.0
        %305 = vmatprep.subr.mxu0 0.0
        %306 = vmatpush1.msra.mxu0 0.0
        %307 = vmatprep.subr.mxu0 0.0
        %308 = vmatpush1.msra.mxu0 0.0
        %309 = vmatprep.mubr.f32.mxu0 0.0
        %310 = vmatmul.mubr.f32.gmra.mrb[0].mxu0 %v206
        %v311 = vpop.f32.mrb[0].mxu0
        %v312 = vadd.f32 %v243, %v311
        %v313 = vpop.f32.mrb[0].mxu0
        %314 = vmatprep.mubr.f32.mxu0 0.0
        %315 = vmatmul.mubr.f32.gmra.mrb[0].mxu0 %v207
        %v316 = vpop.f32.mrb[0].mxu0
        %v317 = vadd.f32 %v243, %v316
        %v318 = vpop.f32.mrb[0].mxu0
        %319 = vmatprep.mubr.f32.mxu0 0.0
        %320 = vmatmul.mubr.f32.gmra.mrb[0].mxu0 %v208
        %v321 = vpop.f32.mrb[0].mxu0
        %v322 = vadd.f32 %v243, %v321
        %v323 = vpop.f32.mrb[0].mxu0
        %324 = vmatprep.mubr.f32.mxu0 0.0
        %325 = vmatmul.mubr.f32.gmra.mrb[0].mxu0 %v209
        %v326 = vpop.f32.mrb[0].mxu0
        %v327 = vadd.f32 %v243, %v326
        %v328 = vpop.f32.mrb[0].mxu0
        %329 = vmatprep.mubr.f32.mxu0 0.0
        %330 = vmatmul.mubr.f32.gmra.mrb[0].mxu0 %v210
        %v331 = vpop.f32.mrb[0].mxu0
        %v332 = vadd.f32 %v243, %v331
        %v333 = vpop.f32.mrb[0].mxu0
        %334 = vmatprep.mubr.f32.mxu0 0.0
        %335 = vmatmul.mubr.f32.gmra.mrb[0].mxu0 %v211
        %v336 = vpop.f32.mrb[0].mxu0
        %v337 = vadd.f32 %v243, %v336
        %v338 = vpop.f32.mrb[0].mxu0
        %339 = vmatprep.mubr.f32.mxu0 0.0
        %340 = vmatmul.mubr.f32.gmra.mrb[0].mxu0 %v212
        %v341 = vpop.f32.mrb[0].mxu0
        %v342 = vadd.f32 %v243, %v341
        %v343 = vpop.f32.mrb[0].mxu0
        %344 = vmatprep.mubr.f32.mxu0 0.0
        %345 = vmatmul.mubr.f32.gmra.mrb[0].mxu0 %v213
        %v346 = vpop.f32.mrb[0].mxu0
        %v347 = vadd.f32 %v243, %v346
        %v348 = vpop.f32.mrb[0].mxu0
        %349 = vmatprep.mubr.f32.mxu0 0.0
        %350 = vmatmul.mubr.f32.gmra.mrb[0].mxu0 %v214
        %v351 = vpop.f32.mrb[0].mxu0
        %v352 = vadd.f32 %v243, %v351
        %v353 = vpop.f32.mrb[0].mxu0
        %354 = vmatprep.mubr.f32.mxu0 0.0
        %355 = vmatmul.mubr.f32.gmra.mrb[0].mxu0 %v215
        %v356 = vpop.f32.mrb[0].mxu0
        %v357 = vadd.f32 %v243, %v356
        %v358 = vpop.f32.mrb[0].mxu0
        %359 = vmatprep.mubr.f32.mxu0 0.0
        %360 = vmatmul.mubr.f32.gmra.mrb[0].mxu0 %v216
        %v361 = vpop.f32.mrb[0].mxu0
        %v362 = vadd.f32 %v243, %v361
        %v363 = vpop.f32.mrb[0].mxu0
        %364 = vmatprep.mubr.f32.mxu0 0.0
        %365 = vmatmul.mubr.f32.gmra.mrb[0].mxu0 %v217
        %v366 = vpop.f32.mrb[0].mxu0
        %v367 = vadd.f32 %v243, %v366
        %v368 = vpop.f32.mrb[0].mxu0
        %369 = vmatprep.mubr.f32.mxu0 0.0
        %370 = vmatmul.mubr.f32.gmra.mrb[0].mxu0 %v218
        %v371 = vpop.f32.mrb[0].mxu0
        %v372 = vadd.f32 %v243, %v371
        %v373 = vpop.f32.mrb[0].mxu0
        %374 = vmatprep.mubr.f32.mxu0 0.0
        %375 = vmatmul.mubr.f32.gmra.mrb[0].mxu0 %v219
        %v376 = vpop.f32.mrb[0].mxu0
        %v377 = vadd.f32 %v243, %v376
        %v378 = vpop.f32.mrb[0].mxu0
        %379 = vmatprep.mubr.f32.mxu0 0.0
        %380 = vmatmul.mubr.f32.gmra.mrb[0].mxu0 %v220
        %v381 = vpop.f32.mrb[0].mxu0
        %v382 = vadd.f32 %v243, %v381
        %v383 = vpop.f32.mrb[0].mxu0
        %384 = vmatprep.mubr.f32.mxu0 0.0
        %385 = vmatmul.mubr.f32.gmra.mrb[0].mxu0 %v221
        %v386 = vpop.f32.mrb[0].mxu0
        %v387 = vadd.f32 %v243, %v386
        %v388 = vpop.f32.mrb[0].mxu0
        %389 = vdwg.mxu0
        %v390 = vpack.c.bf16 %v317, %v312
        %v391 = vpack.c.bf16 %v327, %v322
        %v392 = vpack.c.bf16 %v337, %v332
        %v393 = vpack.c.bf16 %v347, %v342
        %v394 = vpack.c.bf16 %v357, %v352
        %v395 = vpack.c.bf16 %v367, %v362
        %v396 = vpack.c.bf16 %v377, %v372
        %v397 = vpack.c.bf16 %v387, %v382
        %v406 = vunpack.c.l.b16 %v390
        %v407 = vunpack.c.h.b16 %v390
        %v408 = vunpack.c.l.b16 %v391
        %v409 = vunpack.c.h.b16 %v391
        %v410 = vunpack.c.l.b16 %v392
        %v411 = vunpack.c.h.b16 %v392
        %v412 = vunpack.c.l.b16 %v393
        %v413 = vunpack.c.h.b16 %v393
        %v414 = vunpack.c.l.b16 %v394
        %v415 = vunpack.c.h.b16 %v394
        %v416 = vunpack.c.l.b16 %v395
        %v417 = vunpack.c.h.b16 %v395
        %v418 = vunpack.c.l.b16 %v396
        %v419 = vunpack.c.h.b16 %v396
        %v420 = vunpack.c.l.b16 %v397
        %v421 = vunpack.c.h.b16 %v397
        %v422 = vpack.c.b16 %v406, %v406
        %v423 = vpack.c.b16 %v407, %v407
        %v424 = vpack.c.b16 %v408, %v408
        %v425 = vpack.c.b16 %v409, %v409
        %v426 = vpack.c.b16 %v410, %v410
        %v427 = vpack.c.b16 %v411, %v411
        %v428 = vpack.c.b16 %v412, %v412
        %v429 = vpack.c.b16 %v413, %v413
        %v430 = vpack.c.b16 %v414, %v414
        %v431 = vpack.c.b16 %v415, %v415
        %v432 = vpack.c.b16 %v416, %v416
        %v433 = vpack.c.b16 %v417, %v417
        %v434 = vpack.c.b16 %v418, %v418
        %v435 = vpack.c.b16 %v419, %v419
        %v436 = vpack.c.b16 %v420, %v420
        %v437 = vpack.c.b16 %v421, %v421
        %454 = vst [vmem:[%s203] sm:$0xf] %v422
        %455 = vst [vmem:[%s203 + $0x4] sm:$0xf] %v423
        %456 = vst [vmem:[%s203 + $0x8] sm:$0xf] %v424
        %457 = vst [vmem:[%s203 + $0xc] sm:$0xf] %v425
        %458 = vst [vmem:[%s203 + $0x10] sm:$0xf] %v426
        %459 = vst [vmem:[%s203 + $0x14] sm:$0xf] %v427
        %460 = vst [vmem:[%s203 + $0x18] sm:$0xf] %v428
        %461 = vst [vmem:[%s203 + $0x1c] sm:$0xf] %v429
        %462 = vst [vmem:[%s203 + $0x20] sm:$0xf] %v430
        %463 = vst [vmem:[%s203 + $0x24] sm:$0xf] %v431
        %464 = vst [vmem:[%s203 + $0x28] sm:$0xf] %v432
        %465 = vst [vmem:[%s203 + $0x2c] sm:$0xf] %v433
        %466 = vst [vmem:[%s203 + $0x30] sm:$0xf] %v434
        %467 = vst [vmem:[%s203 + $0x34] sm:$0xf] %v435
        %468 = vst [vmem:[%s203 + $0x38] sm:$0xf] %v436
        %469 = vst [vmem:[%s203 + $0x3c] sm:$0xf] %v437
        %s470 = sand.u32 %s97, 1
        %s471 = scalar_lea.sflag [#allocation4], %s470
        %s472 = sand.u32 %s97, 1
        %s473 = smul.addr %s472, 64
        %s474 = scalar_lea.vmem [#allocation7], %s473
        // Predicated region
        $region41: #{tpu_custom_call.1} parent=31 // pred_check
          %p475 = pneg %p107
        $region42: #{tpu_custom_call.1} parent=31 // pred_check_branch
          %477 = sbr.rel (%p475) target = $region44
        $region43: #{tpu_custom_call.1} parent=31 // pred_region
          %s478 = smul.u32 16, %s21
          %s480 = ssub.s32 1024, 1024
          %481 = vsyncadd %s471, %s480
          %s482 = smul.addr %s478, 64
          %s483 = scalar_lea.hbm %s3, %s482
          %s484 = sshll.u32 %s474, 4
          %s485 = int_to_ptr.vmem [resolvable:$true] %s484
          %490 = dma.vmem_to_hbm [thread:$0]  %s485, 1024, %s483, %s471, 64, 64, 4
        $region44: #{tpu_custom_call.1} parent=31 // pred_fallthru
          _
      $region32: #{tpu_custom_call.1} parent=5 // pred_fallthru
        _
      %p491 = scmp.le.s32.totalorder 2, %s16
      // Predicated region
      $region45: #{tpu_custom_call.1} parent=5 // pred_check
        %p492 = pneg %p491
      $region46: #{tpu_custom_call.1} parent=5 // pred_check_branch
        %494 = sbr.rel (%p492) target = $region48
      $region47: #{tpu_custom_call.1} parent=5 // pred_region
        %s495 = ssub.s32 %s16, 2
        // Predicated region
        $region49: #{tpu_custom_call.1} parent=47 // pred_check
          %p496 = pneg %p113
        $region50: #{tpu_custom_call.1} parent=47 // pred_check_branch
          %498 = sbr.rel (%p496) target = $region52
        $region51: #{tpu_custom_call.1} parent=47 // pred_region
          %s499 = sand.u32 %s98, 1
          %s500 = scalar_lea.sflag [#allocation4], %s499
          %s501 = sand.u32 %s98, 1
          %s502 = smul.addr %s501, 64
          %s503 = scalar_lea.vmem [#allocation7], %s502
          %504 = dma.done %s500, 1024
        $region52: #{tpu_custom_call.1} parent=47 // pred_fallthru
          _
      $region48: #{tpu_custom_call.1} parent=5 // pred_fallthru
        _
    $region6: #{tpu_custom_call.1} parent=1 // loop_footer
      %s20 = sadd.s32 1, %s16
    $region7: #{tpu_custom_call.1} parent=1 // loop_footer_branch
      %15 = sbr.rel target = $region3
    $region8: #{tpu_custom_call.1} parent=1 // loop_exit
      _
    %505 = vsyncpa [#allocation3], 1
    %s506 = scalar_lea.sflag [#allocation3], 1
    %507 = vsyncpa %s506, 1
    %508 = vsyncpa [#allocation6], 1
    %509 = vsyncpa [#allocation4], 1
    %s510 = scalar_lea.sflag [#allocation4], 1
    %511 = vsyncpa %s510, 1

</llo_original>
